<compile_context>
chip_gen: v7x
topology: tpu7x:2x2x1
jax: 0.10.0
libtpu: 0.0.40
codegen_flags: <defaults>
</compile_context>

<pallas_src>
import functools

import jax
import jax.numpy as jnp
from jax import lax
from jax.experimental import pallas as pl
from jax.experimental.pallas import tpu as pltpu

_OUT_LANES = 128       # lane-dense output row width per batch element
_PACK_ROWS = 120       # rows of the packed-weights array (sublane aligned)


def _disc_kernel(x_ref, xa_ref, p_ref, o_ref, xs_ref, *, chunk, inv_n):
    # x_ref, xa_ref : [BT, N]    (BT batch rows on sublanes, N on lanes)
    # p_ref         : [120, 128] packed weights (see _pack_params)
    # o_ref         : [BT, 128]  lane-dense output (per-row scalar broadcast on lanes)
    # xs_ref        : [8, N]     layer-1 staging: row0=x, row1=x_aug, row2=1, rows3..7=0
    bt, n = x_ref.shape
    n_chunks = n // chunk

    # ---- unpack weights (static, sublane-aligned views); hoisted out of all loops
    w2t = p_ref[0:16, 0:64]                                    # [16, 64]  = w2.T
    w3t = p_ref[16:24, 0:16]                                   # [8, 16]   = w3.T
    w1aug = p_ref[24:88, 0:8]                                  # [64, 8]: w1a|w1b|b1|0...
    b2_b = jnp.broadcast_to(p_ref[88:104, 0:1], (16, chunk))   # hoisted broadcasts
    b3_b = jnp.broadcast_to(p_ref[104:112, 0:1], (8, chunk))
    w4c = p_ref[104:112, 1:2]                                  # [8, 1]
    b4c = p_ref[112:113, 0:1]                                  # [1, 1]

    # Constant rows of the staging buffer. Re-written every grid step on purpose:
    # scratch is per-core and with a "parallel" grid a core may never see step 0.
    xs_ref[2:3, :] = jnp.ones((1, n), jnp.float32)
    xs_ref[3:8, :] = jnp.zeros((5, n), jnp.float32)

    @pl.loop(0, bt)
    def _(r):
        # Stage this row: layer 1 becomes a single K=8 MXU matmul, bias folded in
        # via the ones row (no lane/sublane broadcasts on the VALU path).
        xs_ref[0:1, :] = x_ref[pl.ds(r, 1), :]
        xs_ref[1:2, :] = xa_ref[pl.ds(r, 1), :]

        def chunk_body(c, acc):
            lo = pl.multiple_of(c * chunk, chunk)
            xs = xs_ref[:, pl.ds(lo, chunk)]                       # [8, CH]
            # layer 1 (2 -> 64), b1 folded via the ones row         [64, CH]
            h1 = jnp.maximum(
                jnp.dot(w1aug, xs, preferred_element_type=jnp.float32), 0.0)
            # layer 2 (64 -> 16)                                    [16, CH]
            h2 = jnp.maximum(
                jnp.dot(w2t, h1, preferred_element_type=jnp.float32) + b2_b, 0.0)
            # layer 3 (16 -> 8)                                     [8, CH]
            h3 = jnp.maximum(
                jnp.dot(w3t, h2, preferred_element_type=jnp.float32) + b3_b, 0.0)
            # fold layer 4 + mean: per-feature sum over this chunk (XLU lane reduce)
            return acc + jnp.sum(h3, axis=1, keepdims=True)         # [8, 1]

        acc = lax.fori_loop(0, n_chunks, chunk_body,
                            jnp.zeros((8, 1), jnp.float32), unroll=True)

        # mean(out) = (colsum . w4) / N + b4   (mean and the last linear commute)
        num = jnp.sum(w4c * acc, axis=0, keepdims=True)              # [1, 1]
        val = num * inv_n + b4c                                      # [1, 1]
        o_ref[pl.ds(r, 1), :] = jnp.broadcast_to(val, (1, o_ref.shape[1]))


def init_params(key):
    """Deterministic PyTorch-Linear-style init. Weights stored as [in, out]."""
    dims = [(2, 64), (64, 16), (16, 8), (8, 1)]
    params = []
    keys = jax.random.split(key, 2 * len(dims))
    for i, (fan_in, fan_out) in enumerate(dims):
        bound = 1.0 / float(fan_in) ** 0.5
        w = jax.random.uniform(keys[2 * i], (fan_in, fan_out),
                               minval=-bound, maxval=bound, dtype=jnp.float32)
        b = jax.random.uniform(keys[2 * i + 1], (1, fan_out),
                               minval=-bound, maxval=bound, dtype=jnp.float32)
        params += [w, b]
    return tuple(params)


def _pack_params(params):
    """Pack all weights/biases into one lane-dense, sublane-aligned [120,128] array."""
    w1, b1, w2, b2, w3, b3, w4, b4 = params
    P = jnp.zeros((_PACK_ROWS, 128), jnp.float32)
    P = P.at[0:16, 0:64].set(w2.T.astype(jnp.float32))        # [16, 64]
    P = P.at[16:24, 0:16].set(w3.T.astype(jnp.float32))       # [8, 16]
    P = P.at[24:88, 0].set(w1[0].astype(jnp.float32))         # layer-1 col for x
    P = P.at[24:88, 1].set(w1[1].astype(jnp.float32))         # layer-1 col for x_aug
    P = P.at[24:88, 2].set(b1[0].astype(jnp.float32))         # b1 (cols 3..7 stay 0)
    P = P.at[88:104, 0].set(b2[0].astype(jnp.float32))        # [16]
    P = P.at[104:112, 0].set(b3[0].astype(jnp.float32))       # [8]
    P = P.at[104:112, 1].set(w4[:, 0].astype(jnp.float32))    # [8]
    P = P.at[112, 0].set(b4[0, 0].astype(jnp.float32))
    return P


@jax.jit
def discriminator_independent_fast(x, x_aug, params):
    """x, x_aug: [B, N] float32 -> is_real: [B] float32."""
    B, N = x.shape
    P = _pack_params(params)

    # Batch tile: amortize the ~0.35us per-grid-step fixed cost, but cap BT so
    # realistic batches keep >= 2 grid steps (v7x has two TensorCores).
    bt = 32 if B >= 64 else 8
    b_pad = ((B + bt - 1) // bt) * bt

    x = x.astype(jnp.float32)
    x_aug = x_aug.astype(jnp.float32)
    if b_pad != B:
        x = jnp.pad(x, ((0, b_pad - B), (0, 0)))
        x_aug = jnp.pad(x_aug, ((0, b_pad - B), (0, 0)))

    # N on lanes; chunk must divide N (chunk=N fallback keeps the block equal to
    # the full trailing dim, so the (8,128) constraint is still satisfied).
    chunk = 512 if N % 512 == 0 else (256 if N % 256 == 0 else
                                      (128 if N % 128 == 0 else N))
    kernel = functools.partial(_disc_kernel, chunk=chunk, inv_n=1.0 / N)

    out = pl.pallas_call(
        kernel,
        out_shape=jax.ShapeDtypeStruct((b_pad, _OUT_LANES), jnp.float32),
        grid=(b_pad // bt,),
        in_specs=[
            pl.BlockSpec((bt, N), lambda i: (i, 0)),             # x rows
            pl.BlockSpec((bt, N), lambda i: (i, 0)),             # x_aug rows
            pl.BlockSpec((_PACK_ROWS, 128), lambda i: (0, 0)),   # packed weights (pinned)
        ],
        out_specs=pl.BlockSpec((bt, _OUT_LANES), lambda i: (i, 0)),
        scratch_shapes=[pltpu.VMEM((8, N), jnp.float32)],        # layer-1 staging buffer
        compiler_params=pltpu.CompilerParams(
            dimension_semantics=("parallel",)),
    )(x, x_aug, P)

    return out[:B, 0]                                            # [B]


def _reference(x, x_aug, params, precision=None):
    """Pure-JAX reference mirroring the PyTorch forward."""
    w1, b1, w2, b2, w3, b3, w4, b4 = params
    mm = lambda a, b: jnp.matmul(a, b, precision=precision)
    data = jnp.stack([x, x_aug], axis=-1)            # [B, N, 2]
    h = jnp.maximum(mm(data, w1) + b1, 0.0)
    h = jnp.maximum(mm(h, w2) + b2, 0.0)
    h = jnp.maximum(mm(h, w3) + b3, 0.0)
    out = (mm(h, w4) + b4)[..., 0]                   # [B, N]
    return jnp.mean(out, axis=1)                     # [B]


if __name__ == "__main__":
    key = jax.random.PRNGKey(0)
    k_p, k_data = jax.random.split(key)
    params = init_params(k_p)

    # Two small cases: B=2 exercises the padded single-step path, B=24 exercises
    # a multi-step grid (weights pinned across steps, batch axis "parallel").
    for B, N in ((2, 1024), (24, 1024)):
        k_x, k_xa, k_data = jax.random.split(k_data, 3)
        x = jax.random.normal(k_x, (B, N), dtype=jnp.float32)
        x_aug = jax.random.normal(k_xa, (B, N), dtype=jnp.float32)

        is_real = discriminator_independent_fast(x, x_aug, params)
        jax.block_until_ready(is_real)
        assert is_real.shape == (B,)

        # Correctness: the kernel's dots use default (single bf16 pass) precision,
        # so the tolerance is a 1e-4 floor plus 8x the platform's own measured
        # default-vs-highest matmul gap on the reference network.
        ref_hi = _reference(x, x_aug, params, precision=lax.Precision.HIGHEST)
        ref_lo = _reference(x, x_aug, params, precision=lax.Precision.DEFAULT)
        gap = float(jnp.max(jnp.abs(ref_hi - ref_lo)))
        tol = 1e-4 + 8.0 * gap
        max_err = float(jnp.max(jnp.abs(is_real - ref_hi)))
        assert max_err <= tol, (B, max_err, tol, is_real, ref_hi)

    print("KERNEL_OK")
</pallas_src>

<mosaic_0001>
module attributes {stable_mosaic.version = 11 : i64} {
  func.func @_disc_kernel(%arg0: i32, %arg1: memref<8x1024xf32, #tpu.memory_space<vmem>>, %arg2: memref<8x1024xf32, #tpu.memory_space<vmem>>, %arg3: memref<120x128xf32, #tpu.memory_space<vmem>>, %arg4: memref<8x128xf32, #tpu.memory_space<vmem>>, %arg5: memref<8x1024xf32, #tpu.memory_space<vmem>>) attributes {dimension_semantics = [#tpu.dimension_semantics<parallel>], iteration_bounds = array<i64: 1>, scalar_prefetch = 0 : i64, scratch_operands = 1 : i64, tpu.core_type = #tpu.core_type<tc>, window_params = [{transform_indices = @transform_0, window_bounds = array<i64: 8, 1024>}, {transform_indices = @transform_1, window_bounds = array<i64: 8, 1024>}, {pipeline_mode = #tpu.pipeline_mode<synchronous>, transform_indices = @transform_2, window_bounds = array<i64: 120, 128>}, {transform_indices = @transform_3, window_bounds = array<i64: 8, 128>}]} {
    %c0 = arith.constant 0 : index
    %c0_0 = arith.constant 0 : index
    %0 = vector.load %arg3[%c0, %c0_0] : memref<120x128xf32, #tpu.memory_space<vmem>>, vector<16x64xf32>
    %c16 = arith.constant 16 : index
    %c0_1 = arith.constant 0 : index
    %1 = vector.load %arg3[%c16, %c0_1] : memref<120x128xf32, #tpu.memory_space<vmem>>, vector<8x16xf32>
    %c24 = arith.constant 24 : index
    %c0_2 = arith.constant 0 : index
    %2 = vector.load %arg3[%c24, %c0_2] : memref<120x128xf32, #tpu.memory_space<vmem>>, vector<64x8xf32>
    %c88 = arith.constant 88 : index
    %c0_3 = arith.constant 0 : index
    %3 = vector.load %arg3[%c88, %c0_3] : memref<120x128xf32, #tpu.memory_space<vmem>>, vector<16x1xf32>
    %4 = vector.shape_cast %3 : vector<16x1xf32> to vector<16x1xf32>
    %5 = vector.broadcast %4 : vector<16x1xf32> to vector<16x512xf32>
    %c104 = arith.constant 104 : index
    %c0_4 = arith.constant 0 : index
    %6 = vector.load %arg3[%c104, %c0_4] : memref<120x128xf32, #tpu.memory_space<vmem>>, vector<8x1xf32>
    %7 = vector.shape_cast %6 : vector<8x1xf32> to vector<8x1xf32>
    %8 = vector.broadcast %7 : vector<8x1xf32> to vector<8x512xf32>
    %c104_5 = arith.constant 104 : index
    %c1 = arith.constant 1 : index
    %9 = vector.load %arg3[%c104_5, %c1] : memref<120x128xf32, #tpu.memory_space<vmem>>, vector<8x1xf32>
    %c112 = arith.constant 112 : index
    %c0_6 = arith.constant 0 : index
    %10 = vector.load %arg3[%c112, %c0_6] : memref<120x128xf32, #tpu.memory_space<vmem>>, vector<1x1xf32>
    %cst = arith.constant 1.000000e+00 : f32
    %11 = vector.broadcast %cst : f32 to vector<1x1024xf32>
    %c2 = arith.constant 2 : index
    %c0_7 = arith.constant 0 : index
    %12 = vector.load %arg5[%c2, %c0_7] : memref<8x1024xf32, #tpu.memory_space<vmem>>, vector<1x1024xf32>
    tpu.vector_store %arg5[%c2, %c0_7], %11 {strides = array<i32>} : memref<8x1024xf32, #tpu.memory_space<vmem>>, vector<1x1024xf32>,
    %cst_8 = arith.constant 0.000000e+00 : f32
    %13 = vector.broadcast %cst_8 : f32 to vector<5x1024xf32>
    %c3 = arith.constant 3 : index
    %c0_9 = arith.constant 0 : index
    %14 = vector.load %arg5[%c3, %c0_9] : memref<8x1024xf32, #tpu.memory_space<vmem>>, vector<5x1024xf32>
    tpu.vector_store %arg5[%c3, %c0_9], %13 {strides = array<i32>} : memref<8x1024xf32, #tpu.memory_space<vmem>>, vector<5x1024xf32>,
    %c0_i32 = arith.constant 0 : i32
    %c8_i32 = arith.constant 8 : i32
    %15 = arith.addi %c0_i32, %c8_i32 : i32
    %c1_i32 = arith.constant 1 : i32
    scf.for %arg6 = %c0_i32 to %15 step %c1_i32  : i32 {
      %c1_i32_11 = arith.constant 1 : i32
      %16 = arith.muli %arg6, %c1_i32_11 : i32
      %c0_i32_12 = arith.constant 0 : i32
      %17 = arith.addi %c0_i32_12, %16 : i32
      %18 = arith.index_cast %17 : i32 to index
      %c0_13 = arith.constant 0 : index
      %19 = vector.load %arg1[%18, %c0_13] : memref<8x1024xf32, #tpu.memory_space<vmem>>, vector<1x1024xf32>
      %c0_14 = arith.constant 0 : index
      %c0_15 = arith.constant 0 : index
      %20 = vector.load %arg5[%c0_14, %c0_15] : memref<8x1024xf32, #tpu.memory_space<vmem>>, vector<1x1024xf32>
      tpu.vector_store %arg5[%c0_14, %c0_15], %19 {strides = array<i32>} : memref<8x1024xf32, #tpu.memory_space<vmem>>, vector<1x1024xf32>,
      %21 = arith.index_cast %17 : i32 to index
      %c0_16 = arith.constant 0 : index
      %22 = vector.load %arg2[%21, %c0_16] : memref<8x1024xf32, #tpu.memory_space<vmem>>, vector<1x1024xf32>
      %c1_17 = arith.constant 1 : index
      %c0_18 = arith.constant 0 : index
      %23 = vector.load %arg5[%c1_17, %c0_18] : memref<8x1024xf32, #tpu.memory_space<vmem>>, vector<1x1024xf32>
      tpu.vector_store %arg5[%c1_17, %c0_18], %22 {strides = array<i32>} : memref<8x1024xf32, #tpu.memory_space<vmem>>, vector<1x1024xf32>,
      %cst_19 = arith.constant 0.000000e+00 : f32
      %24 = vector.broadcast %cst_19 : f32 to vector<8x1xf32>
      %c0_i32_20 = arith.constant 0 : i32
      %c512_i32 = arith.constant 512 : i32
      %25 = arith.muli %c0_i32_20, %c512_i32 : i32
      %26 = tpu.assume_multiple %25, 512 : i32
      %c0_21 = arith.constant 0 : index
      %27 = arith.index_cast %26 : i32 to index
      %28 = vector.load %arg5[%c0_21, %27] : memref<8x1024xf32, #tpu.memory_space<vmem>>, vector<8x512xf32>
      %cst_22 = arith.constant dense<0.000000e+00> : vector<64x512xf32>
      %29 = tpu.matmul %2, %28, %cst_22 {dimension_numbers = #tpu.dot_dimension_numbers<[1], [0], [0], [1], [0, 0, 1, 1], [], []>} : vector<64x8xf32>, vector<8x512xf32>, vector<64x512xf32> -> vector<64x512xf32>
      %cst_23 = arith.constant 0.000000e+00 : f32
      %30 = vector.broadcast %cst_23 : f32 to vector<64x512xf32>
      %31 = arith.maximumf %29, %30 : vector<64x512xf32>
      %cst_24 = arith.constant dense<0.000000e+00> : vector<16x512xf32>
      %32 = tpu.matmul %0, %31, %cst_24 {dimension_numbers = #tpu.dot_dimension_numbers<[1], [0], [0], [1], [0, 0, 1, 1], [], []>} : vector<16x64xf32>, vector<64x512xf32>, vector<16x512xf32> -> vector<16x512xf32>
      %33 = arith.addf %32, %5 : vector<16x512xf32>
      %cst_25 = arith.constant 0.000000e+00 : f32
      %34 = vector.broadcast %cst_25 : f32 to vector<16x512xf32>
      %35 = arith.maximumf %33, %34 : vector<16x512xf32>
      %cst_26 = arith.constant dense<0.000000e+00> : vector<8x512xf32>
      %36 = tpu.matmul %1, %35, %cst_26 {dimension_numbers = #tpu.dot_dimension_numbers<[1], [0], [0], [1], [0, 0, 1, 1], [], []>} : vector<8x16xf32>, vector<16x512xf32>, vector<8x512xf32> -> vector<8x512xf32>
      %37 = arith.addf %36, %8 : vector<8x512xf32>
      %cst_27 = arith.constant 0.000000e+00 : f32
      %38 = vector.broadcast %cst_27 : f32 to vector<8x512xf32>
      %39 = arith.maximumf %37, %38 : vector<8x512xf32>
      %cst_28 = arith.constant dense<0.000000e+00> : vector<8xf32>
      %40 = vector.multi_reduction <add>, %39, %cst_28 [1] : vector<8x512xf32> to vector<8xf32>
      %41 = vector.shape_cast %40 : vector<8xf32> to vector<8x1xf32>
      %42 = arith.addf %24, %41 : vector<8x1xf32>
      %c1_i32_29 = arith.constant 1 : i32
      %c512_i32_30 = arith.constant 512 : i32
      %43 = arith.muli %c1_i32_29, %c512_i32_30 : i32
      %44 = tpu.assume_multiple %43, 512 : i32
      %c0_31 = arith.constant 0 : index
      %45 = arith.index_cast %44 : i32 to index
      %46 = vector.load %arg5[%c0_31, %45] : memref<8x1024xf32, #tpu.memory_space<vmem>>, vector<8x512xf32>
      %cst_32 = arith.constant dense<0.000000e+00> : vector<64x512xf32>
      %47 = tpu.matmul %2, %46, %cst_32 {dimension_numbers = #tpu.dot_dimension_numbers<[1], [0], [0], [1], [0, 0, 1, 1], [], []>} : vector<64x8xf32>, vector<8x512xf32>, vector<64x512xf32> -> vector<64x512xf32>
      %cst_33 = arith.constant 0.000000e+00 : f32
      %48 = vector.broadcast %cst_33 : f32 to vector<64x512xf32>
      %49 = arith.maximumf %47, %48 : vector<64x512xf32>
      %cst_34 = arith.constant dense<0.000000e+00> : vector<16x512xf32>
      %50 = tpu.matmul %0, %49, %cst_34 {dimension_numbers = #tpu.dot_dimension_numbers<[1], [0], [0], [1], [0, 0, 1, 1], [], []>} : vector<16x64xf32>, vector<64x512xf32>, vector<16x512xf32> -> vector<16x512xf32>
      %51 = arith.addf %50, %5 : vector<16x512xf32>
      %cst_35 = arith.constant 0.000000e+00 : f32
      %52 = vector.broadcast %cst_35 : f32 to vector<16x512xf32>
      %53 = arith.maximumf %51, %52 : vector<16x512xf32>
      %cst_36 = arith.constant dense<0.000000e+00> : vector<8x512xf32>
      %54 = tpu.matmul %1, %53, %cst_36 {dimension_numbers = #tpu.dot_dimension_numbers<[1], [0], [0], [1], [0, 0, 1, 1], [], []>} : vector<8x16xf32>, vector<16x512xf32>, vector<8x512xf32> -> vector<8x512xf32>
      %55 = arith.addf %54, %8 : vector<8x512xf32>
      %cst_37 = arith.constant 0.000000e+00 : f32
      %56 = vector.broadcast %cst_37 : f32 to vector<8x512xf32>
      %57 = arith.maximumf %55, %56 : vector<8x512xf32>
      %cst_38 = arith.constant dense<0.000000e+00> : vector<8xf32>
      %58 = vector.multi_reduction <add>, %57, %cst_38 [1] : vector<8x512xf32> to vector<8xf32>
      %59 = vector.shape_cast %58 : vector<8xf32> to vector<8x1xf32>
      %60 = arith.addf %42, %59 : vector<8x1xf32>
      %c2_i32 = arith.constant 2 : i32
      %61 = arith.mulf %9, %60 : vector<8x1xf32>
      %cst_39 = arith.constant dense<0.000000e+00> : vector<1xf32>
      %62 = vector.multi_reduction <add>, %61, %cst_39 [0] : vector<8x1xf32> to vector<1xf32>
      %63 = vector.shape_cast %62 : vector<1xf32> to vector<1x1xf32>
      %cst_40 = arith.constant 9.765625E-4 : f32
      %64 = vector.broadcast %cst_40 : f32 to vector<1x1xf32>
      %65 = arith.mulf %63, %64 : vector<1x1xf32>
      %66 = arith.addf %65, %10 : vector<1x1xf32>
      %67 = vector.shape_cast %66 : vector<1x1xf32> to vector<1x1xf32>
      %68 = vector.broadcast %67 : vector<1x1xf32> to vector<1x128xf32>
      %69 = arith.index_cast %17 : i32 to index
      %c0_41 = arith.constant 0 : index
      %70 = vector.load %arg4[%69, %c0_41] : memref<8x128xf32, #tpu.memory_space<vmem>>, vector<1x128xf32>
      tpu.vector_store %arg4[%69, %c0_41], %68 {strides = array<i32>} : memref<8x128xf32, #tpu.memory_space<vmem>>, vector<1x128xf32>,
    }
    %c8_i32_10 = arith.constant 8 : i32
    return
  }
  func.func @transform_0(%arg0: i32) -> (i32, i32) {
    %c0_i32 = arith.constant 0 : i32
    %c0_i32_0 = arith.constant 0 : i32
    return %arg0, %c0_i32 : i32, i32
  }
  func.func @transform_1(%arg0: i32) -> (i32, i32) {
    %c0_i32 = arith.constant 0 : i32
    %c0_i32_0 = arith.constant 0 : i32
    return %arg0, %c0_i32 : i32, i32
  }
  func.func @transform_2(%arg0: i32) -> (i32, i32) {
    %c0_i32 = arith.constant 0 : i32
    %c0_i32_0 = arith.constant 0 : i32
    %c0_i32_1 = arith.constant 0 : i32
    return %c0_i32, %c0_i32_0 : i32, i32
  }
  func.func @transform_3(%arg0: i32) -> (i32, i32) {
    %c0_i32 = arith.constant 0 : i32
    %c0_i32_0 = arith.constant 0 : i32
    return %arg0, %c0_i32 : i32, i32
  }
}

</mosaic_0001>

<llo_original>
// kernel: discriminator_independent_fast.1
$region0: #{discriminator_independent_fast.1}
  #allocation0 [shape = 'u32[]', space=smem, size = 0x4, offset = 0x4, fixed_abs, tag = 'smem constant byte address 0x4 - core index']
  #allocation1 [shape = 'u32[144,128]{1,0:T(1,128)}', space=vmem, size = 0x12000, scoped, tag = 'internal scratch']
  #allocation2 [shape = 'f32[8,1024]{1,0:T(8,128)}', space=vmem, size = 0x8000, scoped, tag = 'scratch operand']
  %s0 = inlined_call_operand.vmem [shape: f32[8,1024], index: 0, kind: input, shape index: {}]
  %s1 = inlined_call_operand.vmem [shape: f32[8,1024], index: 1, kind: input, shape index: {}]
  %s2 = inlined_call_operand.vmem [shape: f32[120,128], index: 2, kind: input, shape index: {}]
  %s3 = inlined_call_operand.vmem [shape: f32[8,128], index: 3, kind: output, shape index: {}]
  %s4 = sld [smem:[#allocation0]]
  $region29: #{discriminator_independent_fast.1} parent=0
    _
  %s6 = ssub.s32 1, %s4
  %s7 = scalar_select 0, %s6, %s4
  // Predicated region
  $region2: #{discriminator_independent_fast.1} parent=0 // pred_check
    _
  $region3: #{discriminator_independent_fast.1} parent=0 // pred_check_branch
    %9 = sbr.rel (0) target = $region5
  $region4: #{discriminator_independent_fast.1} parent=0 // pred_region
    _
  $region5: #{discriminator_independent_fast.1} parent=0 // pred_fallthru
    _
  // Predicated region
  $region6: #{discriminator_independent_fast.1} parent=0 // pred_check
    _
  $region7: #{discriminator_independent_fast.1} parent=0 // pred_check_branch
    %11 = sbr.rel (0) target = $region9
  $region8: #{discriminator_independent_fast.1} parent=0 // pred_region
    _
  $region9: #{discriminator_independent_fast.1} parent=0 // pred_fallthru
    _
  // Predicated region
  $region10: #{discriminator_independent_fast.1} parent=0 // pred_check
    _
  $region11: #{discriminator_independent_fast.1} parent=0 // pred_check_branch
    %13 = sbr.rel (0) target = $region13
  $region12: #{discriminator_independent_fast.1} parent=0 // pred_region
    _
  $region13: #{discriminator_independent_fast.1} parent=0 // pred_fallthru
    _
  %v14 = vld [vmem:[%s2] sm:$0xff]
  %v15 = vld [vmem:[%s2 + $0x8] sm:$0xff]
  %v16 = vld [vmem:[%s2 + $0x10] sm:$0xff]
  %v17 = vld [vmem:[%s2 + $0x18] sm:$0xff]
  %v18 = vld [vmem:[%s2 + $0x20] sm:$0xff]
  %v19 = vld [vmem:[%s2 + $0x28] sm:$0xff]
  %v20 = vld [vmem:[%s2 + $0x30] sm:$0xff]
  %v21 = vld [vmem:[%s2 + $0x38] sm:$0xff]
  %v22 = vld [vmem:[%s2 + $0x40] sm:$0xff]
  %v23 = vld [vmem:[%s2 + $0x48] sm:$0xff]
  %v24 = vld [vmem:[%s2 + $0x50] sm:$0xff]
  %v25 = vld [vmem:[%s2 + $0x58] sm:$0xff]
  %v26 = vld [vmem:[%s2 + $0x60] sm:$0xff]
  %28 = vset.pattern.permute.xlu0 0
  %29 = vperm.xlu0 %28, %v25
  %v30 = vpop.permute.xlu0 %29
  %33 = vset.pattern.permute.xlu0 0
  %34 = vperm.xlu0 %33, %v26
  %v35 = vpop.permute.xlu0 %34
  %v37 = vld [vmem:[%s2 + $0x68] sm:$0xff]
  %39 = vset.pattern.permute.xlu0 0
  %40 = vperm.xlu0 %39, %v37
  %v41 = vpop.permute.xlu0 %40
  %v43 = vld [vmem:[%s2 + $0x70] sm:$0x1]
  %s44 = scalar_lea.vmem [#allocation2], 2
  %45 = vst [vmem:[%s44] ss:$8 sm:$0xf] 1.0
  %46 = vst [vmem:[%s44] ss:$8 sm:$0xf0] 1.0
  %47 = vst [vmem:[#allocation2] sm:$0xf8] 0.0
  %48 = vst [vmem:[#allocation2 + $0x8] sm:$0xf8] 0.0
  %49 = vst [vmem:[#allocation2 + $0x10] sm:$0xf8] 0.0
  %50 = vst [vmem:[#allocation2 + $0x18] sm:$0xf8] 0.0
  %51 = vst [vmem:[#allocation2 + $0x20] sm:$0xf8] 0.0
  %52 = vst [vmem:[#allocation2 + $0x28] sm:$0xf8] 0.0
  %53 = vst [vmem:[#allocation2 + $0x30] sm:$0xf8] 0.0
  %54 = vst [vmem:[#allocation2 + $0x38] sm:$0xf8] 0.0
  loop: start=0, step=1, limit=8
  $region14: #{discriminator_independent_fast.1} parent=0 // loop_pre_header
    _
  $region15: #{discriminator_independent_fast.1} parent=0 // loop_header
    %s56 = sphi 0, %s60
    %p57 = scmp.ge.s32.totalorder %s56, 8
  $region16: #{discriminator_independent_fast.1} parent=0 // loop_header_branch
    %59 = sbr.rel (%p57) target = $region20
  $region17: #{discriminator_independent_fast.1} parent=0 // loop_body
    %s61 = sshra.s32 %s56, 3
    %s62 = sand.u32 %s56, 7
    %s63 = sshra.s32 %s56, 3
    %s64 = sand.u32 %s56, 7
    %s65 = smul.u32 %s61, 8
    %s66 = smul.u32 %s65, 8
    %s67 = sadd.s32 %s66, %s64
    %s68 = scalar_lea.vmem %s0, %s67
    %v69 = vld [vmem:[%s68] ss:$8 sm:$0xf]
    %v70 = vld [vmem:[%s68] ss:$8 sm:$0xf0]
    %v71 = vor.u32 %v69, %v70
    %72 = vst [vmem:[#allocation2] ss:$8 sm:$0xf] %v71
    %73 = vst [vmem:[#allocation2] ss:$8 sm:$0xf0] %v71
    %s74 = scalar_lea.vmem %s1, %s67
    %v75 = vld [vmem:[%s74] ss:$8 sm:$0xf]
    %v76 = vld [vmem:[%s74] ss:$8 sm:$0xf0]
    %v77 = vor.u32 %v75, %v76
    %s78 = scalar_lea.vmem [#allocation2], 1
    %79 = vst [vmem:[%s78] ss:$8 sm:$0xf] %v77
    %80 = vst [vmem:[%s78] ss:$8 sm:$0xf0] %v77
    %v81 = vld [vmem:[#allocation2] sm:$0xff]
    %v82 = vld [vmem:[#allocation2 + $0x8] sm:$0xff]
    %v83 = vld [vmem:[#allocation2 + $0x10] sm:$0xff]
    %v84 = vld [vmem:[#allocation2 + $0x18] sm:$0xff]
    %vm85 = vcmask 64512
    %v87 = vsel %vm85, %v17, 0
    %v90 = vsel %vm85, %v18, 0
    %v93 = vsel %vm85, %v19, 0
    %v96 = vsel %vm85, %v20, 0
    %v99 = vsel %vm85, %v21, 0
    %v102 = vsel %vm85, %v22, 0
    %v105 = vsel %vm85, %v23, 0
    %v108 = vsel %vm85, %v24, 0
    %110 = vmatprep.subr.mxu0 %v82
    %111 = vmatpush1.msra.mxu0 %v81
    %112 = vmatprep.subr.mxu0 0.0
    %113 = vmatpush1.msra.mxu0 0.0
    %114 = vmatprep.subr.mxu0 0.0
    %115 = vmatpush1.msra.mxu0 0.0
    %116 = vmatprep.subr.mxu0 0.0
    %117 = vmatpush1.msra.mxu0 0.0
    %118 = vmatprep.subr.mxu0 0.0
    %119 = vmatpush1.msra.mxu0 0.0
    %120 = vmatprep.subr.mxu0 0.0
    %121 = vmatpush1.msra.mxu0 0.0
    %122 = vmatprep.subr.mxu0 0.0
    %123 = vmatpush1.msra.mxu0 0.0
    %124 = vmatprep.subr.mxu0 0.0
    %125 = vmatpush1.msra.mxu0 0.0
    %126 = vmatprep.subr.mxu0 0.0
    %127 = vmatpush1.msra.mxu0 0.0
    %128 = vmatprep.subr.mxu0 0.0
    %129 = vmatpush1.msra.mxu0 0.0
    %130 = vmatprep.subr.mxu0 0.0
    %131 = vmatpush1.msra.mxu0 0.0
    %132 = vmatprep.subr.mxu0 0.0
    %133 = vmatpush1.msra.mxu0 0.0
    %134 = vmatprep.subr.mxu0 0.0
    %135 = vmatpush1.msra.mxu0 0.0
    %136 = vmatprep.subr.mxu0 0.0
    %137 = vmatpush1.msra.mxu0 0.0
    %138 = vmatprep.subr.mxu0 0.0
    %139 = vmatpush1.msra.mxu0 0.0
    %140 = vmatprep.subr.mxu0 0.0
    %141 = vmatpush1.msra.mxu0 0.0
    %142 = vmatprep.subr.mxu0 0.0
    %143 = vmatpush1.msra.mxu0 0.0
    %144 = vmatprep.subr.mxu0 0.0
    %145 = vmatpush1.msra.mxu0 0.0
    %146 = vmatprep.subr.mxu0 0.0
    %147 = vmatpush1.msra.mxu0 0.0
    %148 = vmatprep.subr.mxu0 0.0
    %149 = vmatpush1.msra.mxu0 0.0
    %150 = vmatprep.subr.mxu0 0.0
    %151 = vmatpush1.msra.mxu0 0.0
    %152 = vmatprep.subr.mxu0 0.0
    %153 = vmatpush1.msra.mxu0 0.0
    %154 = vmatprep.subr.mxu0 0.0
    %155 = vmatpush1.msra.mxu0 0.0
    %156 = vmatprep.subr.mxu0 0.0
    %157 = vmatpush1.msra.mxu0 0.0
    %158 = vmatprep.subr.mxu0 0.0
    %159 = vmatpush1.msra.mxu0 0.0
    %160 = vmatprep.subr.mxu0 0.0
    %161 = vmatpush1.msra.mxu0 0.0
    %162 = vmatprep.subr.mxu0 0.0
    %163 = vmatpush1.msra.mxu0 0.0
    %164 = vmatprep.subr.mxu0 0.0
    %165 = vmatpush1.msra.mxu0 0.0
    %166 = vmatprep.subr.mxu0 0.0
    %167 = vmatpush1.msra.mxu0 0.0
    %168 = vmatprep.subr.mxu0 0.0
    %169 = vmatpush1.msra.mxu0 0.0
    %170 = vmatprep.subr.mxu0 0.0
    %171 = vmatpush1.msra.mxu0 0.0
    %172 = vmatprep.subr.mxu0 0.0
    %173 = vmatpush1.msra.mxu0 0.0
    %174 = vmatprep.mubr.f32.mxu0 0.0
    %175 = vmatmul.mubr.f32.gmra.mrb[0].mxu0 %v87
    %v176 = vpop.f32.mrb[0].mxu0
    %v177 = vadd.f32 0.0, %v176
    %v178 = vpop.f32.mrb[0].mxu0
    %v179 = vadd.f32 0.0, %v178
    %180 = vmatprep.mubr.f32.mxu0 0.0
    %181 = vmatmul.mubr.f32.gmra.mrb[0].mxu0 %v90
    %v182 = vpop.f32.mrb[0].mxu0
    %v183 = vadd.f32 0.0, %v182
    %v184 = vpop.f32.mrb[0].mxu0
    %v185 = vadd.f32 0.0, %v184
    %186 = vmatprep.mubr.f32.mxu0 0.0
    %187 = vmatmul.mubr.f32.gmra.mrb[0].mxu0 %v93
    %v188 = vpop.f32.mrb[0].mxu0
    %v189 = vadd.f32 0.0, %v188
    %v190 = vpop.f32.mrb[0].mxu0
    %v191 = vadd.f32 0.0, %v190
    %192 = vmatprep.mubr.f32.mxu0 0.0
    %193 = vmatmul.mubr.f32.gmra.mrb[0].mxu0 %v96
    %v194 = vpop.f32.mrb[0].mxu0
    %v195 = vadd.f32 0.0, %v194
    %v196 = vpop.f32.mrb[0].mxu0
    %v197 = vadd.f32 0.0, %v196
    %198 = vmatprep.mubr.f32.mxu0 0.0
    %199 = vmatmul.mubr.f32.gmra.mrb[0].mxu0 %v99
    %v200 = vpop.f32.mrb[0].mxu0
    %v201 = vadd.f32 0.0, %v200
    %v202 = vpop.f32.mrb[0].mxu0
    %v203 = vadd.f32 0.0, %v202
    %204 = vmatprep.mubr.f32.mxu0 0.0
    %205 = vmatmul.mubr.f32.gmra.mrb[0].mxu0 %v102
    %v206 = vpop.f32.mrb[0].mxu0
    %v207 = vadd.f32 0.0, %v206
    %v208 = vpop.f32.mrb[0].mxu0
    %v209 = vadd.f32 0.0, %v208
    %210 = vmatprep.mubr.f32.mxu0 0.0
    %211 = vmatmul.mubr.f32.gmra.mrb[0].mxu0 %v105
    %v212 = vpop.f32.mrb[0].mxu0
    %v213 = vadd.f32 0.0, %v212
    %v214 = vpop.f32.mrb[0].mxu0
    %v215 = vadd.f32 0.0, %v214
    %216 = vmatprep.mubr.f32.mxu0 0.0
    %217 = vmatmul.mubr.f32.gmra.mrb[0].mxu0 %v108
    %v218 = vpop.f32.mrb[0].mxu0
    %v219 = vadd.f32 0.0, %v218
    %v220 = vpop.f32.mrb[0].mxu0
    %v221 = vadd.f32 0.0, %v220
    %222 = vdwg.mxu0
    %223 = vmatprep.subr.mxu0 %v84
    %224 = vmatpush1.msra.mxu0 %v83
    %225 = vmatprep.subr.mxu0 0.0
    %226 = vmatpush1.msra.mxu0 0.0
    %227 = vmatprep.subr.mxu0 0.0
    %228 = vmatpush1.msra.mxu0 0.0
    %229 = vmatprep.subr.mxu0 0.0
    %230 = vmatpush1.msra.mxu0 0.0
    %231 = vmatprep.subr.mxu0 0.0
    %232 = vmatpush1.msra.mxu0 0.0
    %233 = vmatprep.subr.mxu0 0.0
    %234 = vmatpush1.msra.mxu0 0.0
    %235 = vmatprep.subr.mxu0 0.0
    %236 = vmatpush1.msra.mxu0 0.0
    %237 = vmatprep.subr.mxu0 0.0
    %238 = vmatpush1.msra.mxu0 0.0
    %239 = vmatprep.subr.mxu0 0.0
    %240 = vmatpush1.msra.mxu0 0.0
    %241 = vmatprep.subr.mxu0 0.0
    %242 = vmatpush1.msra.mxu0 0.0
    %243 = vmatprep.subr.mxu0 0.0
    %244 = vmatpush1.msra.mxu0 0.0
    %245 = vmatprep.subr.mxu0 0.0
    %246 = vmatpush1.msra.mxu0 0.0
    %247 = vmatprep.subr.mxu0 0.0
    %248 = vmatpush1.msra.mxu0 0.0
    %249 = vmatprep.subr.mxu0 0.0
    %250 = vmatpush1.msra.mxu0 0.0
    %251 = vmatprep.subr.mxu0 0.0
    %252 = vmatpush1.msra.mxu0 0.0
    %253 = vmatprep.subr.mxu0 0.0
    %254 = vmatpush1.msra.mxu0 0.0
    %255 = vmatprep.subr.mxu0 0.0
    %256 = vmatpush1.msra.mxu0 0.0
    %257 = vmatprep.subr.mxu0 0.0
    %258 = vmatpush1.msra.mxu0 0.0
    %259 = vmatprep.subr.mxu0 0.0
    %260 = vmatpush1.msra.mxu0 0.0
    %261 = vmatprep.subr.mxu0 0.0
    %262 = vmatpush1.msra.mxu0 0.0
    %263 = vmatprep.subr.mxu0 0.0
    %264 = vmatpush1.msra.mxu0 0.0
    %265 = vmatprep.subr.mxu0 0.0
    %266 = vmatpush1.msra.mxu0 0.0
    %267 = vmatprep.subr.mxu0 0.0
    %268 = vmatpush1.msra.mxu0 0.0
    %269 = vmatprep.subr.mxu0 0.0
    %270 = vmatpush1.msra.mxu0 0.0
    %271 = vmatprep.subr.mxu0 0.0
    %272 = vmatpush1.msra.mxu0 0.0
    %273 = vmatprep.subr.mxu0 0.0
    %274 = vmatpush1.msra.mxu0 0.0
    %275 = vmatprep.subr.mxu0 0.0
    %276 = vmatpush1.msra.mxu0 0.0
    %277 = vmatprep.subr.mxu0 0.0
    %278 = vmatpush1.msra.mxu0 0.0
    %279 = vmatprep.subr.mxu0 0.0
    %280 = vmatpush1.msra.mxu0 0.0
    %281 = vmatprep.subr.mxu0 0.0
    %282 = vmatpush1.msra.mxu0 0.0
    %283 = vmatprep.subr.mxu0 0.0
    %284 = vmatpush1.msra.mxu0 0.0
    %285 = vmatprep.subr.mxu0 0.0
    %286 = vmatpush1.msra.mxu0 0.0
    %287 = vmatprep.mubr.f32.mxu0 0.0
    %288 = vmatmul.mubr.f32.gmra.mrb[0].mxu0 %v87
    %v289 = vpop.f32.mrb[0].mxu0
    %v290 = vadd.f32 0.0, %v289
    %v291 = vpop.f32.mrb[0].mxu0
    %v292 = vadd.f32 0.0, %v291
    %293 = vmatprep.mubr.f32.mxu0 0.0
    %294 = vmatmul.mubr.f32.gmra.mrb[0].mxu0 %v90
    %v295 = vpop.f32.mrb[0].mxu0
    %v296 = vadd.f32 0.0, %v295
    %v297 = vpop.f32.mrb[0].mxu0
    %v298 = vadd.f32 0.0, %v297
    %299 = vmatprep.mubr.f32.mxu0 0.0
    %300 = vmatmul.mubr.f32.gmra.mrb[0].mxu0 %v93
    %v301 = vpop.f32.mrb[0].mxu0
    %v302 = vadd.f32 0.0, %v301
    %v303 = vpop.f32.mrb[0].mxu0
    %v304 = vadd.f32 0.0, %v303
    %305 = vmatprep.mubr.f32.mxu0 0.0
    %306 = vmatmul.mubr.f32.gmra.mrb[0].mxu0 %v96
    %v307 = vpop.f32.mrb[0].mxu0
    %v308 = vadd.f32 0.0, %v307
    %v309 = vpop.f32.mrb[0].mxu0
    %v310 = vadd.f32 0.0, %v309
    %311 = vmatprep.mubr.f32.mxu0 0.0
    %312 = vmatmul.mubr.f32.gmra.mrb[0].mxu0 %v99
    %v313 = vpop.f32.mrb[0].mxu0
    %v314 = vadd.f32 0.0, %v313
    %v315 = vpop.f32.mrb[0].mxu0
    %v316 = vadd.f32 0.0, %v315
    %317 = vmatprep.mubr.f32.mxu0 0.0
    %318 = vmatmul.mubr.f32.gmra.mrb[0].mxu0 %v102
    %v319 = vpop.f32.mrb[0].mxu0
    %v320 = vadd.f32 0.0, %v319
    %v321 = vpop.f32.mrb[0].mxu0
    %v322 = vadd.f32 0.0, %v321
    %323 = vmatprep.mubr.f32.mxu0 0.0
    %324 = vmatmul.mubr.f32.gmra.mrb[0].mxu0 %v105
    %v325 = vpop.f32.mrb[0].mxu0
    %v326 = vadd.f32 0.0, %v325
    %v327 = vpop.f32.mrb[0].mxu0
    %v328 = vadd.f32 0.0, %v327
    %329 = vmatprep.mubr.f32.mxu0 0.0
    %330 = vmatmul.mubr.f32.gmra.mrb[0].mxu0 %v108
    %v331 = vpop.f32.mrb[0].mxu0
    %v332 = vadd.f32 0.0, %v331
    %v333 = vpop.f32.mrb[0].mxu0
    %v334 = vadd.f32 0.0, %v333
    %335 = vdwg.mxu0
    %v336 = vmax.f32 %v177, 0.0
    %v337 = vmax.f32 %v179, 0.0
    %v338 = vmax.f32 %v290, 0.0
    %v339 = vmax.f32 %v292, 0.0
    %v340 = vmax.f32 %v183, 0.0
    %v341 = vmax.f32 %v185, 0.0
    %v342 = vmax.f32 %v296, 0.0
    %v343 = vmax.f32 %v298, 0.0
    %v344 = vmax.f32 %v189, 0.0
    %v345 = vmax.f32 %v191, 0.0
    %v346 = vmax.f32 %v302, 0.0
    %v347 = vmax.f32 %v304, 0.0
    %v348 = vmax.f32 %v195, 0.0
    %v349 = vmax.f32 %v197, 0.0
    %v350 = vmax.f32 %v308, 0.0
    %v351 = vmax.f32 %v310, 0.0
    %v352 = vmax.f32 %v201, 0.0
    %v353 = vmax.f32 %v203, 0.0
    %v354 = vmax.f32 %v314, 0.0
    %v355 = vmax.f32 %v316, 0.0
    %v356 = vmax.f32 %v207, 0.0
    %v357 = vmax.f32 %v209, 0.0
    %v358 = vmax.f32 %v320, 0.0
    %v359 = vmax.f32 %v322, 0.0
    %v360 = vmax.f32 %v213, 0.0
    %v361 = vmax.f32 %v215, 0.0
    %v362 = vmax.f32 %v326, 0.0
    %v363 = vmax.f32 %v328, 0.0
    %v364 = vmax.f32 %v219, 0.0
    %v365 = vmax.f32 %v221, 0.0
    %v366 = vmax.f32 %v332, 0.0
    %v367 = vmax.f32 %v334, 0.0
    %vm368 = vcmask 523264
    %v370 = vsel %vm368, %v14, 0
    %v373 = vsel %vm368, %v15, 0
    %375 = vmatprep.subr.mxu0 %v337
    %376 = vmatpush1.msra.mxu0 %v336
    %377 = vmatprep.subr.mxu0 %v341
    %378 = vmatpush1.msra.mxu0 %v340
    %379 = vmatprep.subr.mxu0 %v345
    %380 = vmatpush1.msra.mxu0 %v344
    %381 = vmatprep.subr.mxu0 %v349
    %382 = vmatpush1.msra.mxu0 %v348
    %383 = vmatprep.subr.mxu0 %v353
    %384 = vmatpush1.msra.mxu0 %v352
    %385 = vmatprep.subr.mxu0 %v357
    %386 = vmatpush1.msra.mxu0 %v356
    %387 = vmatprep.subr.mxu0 %v361
    %388 = vmatpush1.msra.mxu0 %v360
    %389 = vmatprep.subr.mxu0 %v365
    %390 = vmatpush1.msra.mxu0 %v364
    %391 = vmatprep.subr.mxu0 0.0
    %392 = vmatpush1.msra.mxu0 0.0
    %393 = vmatprep.subr.mxu0 0.0
    %394 = vmatpush1.msra.mxu0 0.0
    %395 = vmatprep.subr.mxu0 0.0
    %396 = vmatpush1.msra.mxu0 0.0
    %397 = vmatprep.subr.mxu0 0.0
    %398 = vmatpush1.msra.mxu0 0.0
    %399 = vmatprep.subr.mxu0 0.0
    %400 = vmatpush1.msra.mxu0 0.0
    %401 = vmatprep.subr.mxu0 0.0
    %402 = vmatpush1.msra.mxu0 0.0
    %403 = vmatprep.subr.mxu0 0.0
    %404 = vmatpush1.msra.mxu0 0.0
    %405 = vmatprep.subr.mxu0 0.0
    %406 = vmatpush1.msra.mxu0 0.0
    %407 = vmatprep.subr.mxu0 0.0
    %408 = vmatpush1.msra.mxu0 0.0
    %409 = vmatprep.subr.mxu0 0.0
    %410 = vmatpush1.msra.mxu0 0.0
    %411 = vmatprep.subr.mxu0 0.0
    %412 = vmatpush1.msra.mxu0 0.0
    %413 = vmatprep.subr.mxu0 0.0
    %414 = vmatpush1.msra.mxu0 0.0
    %415 = vmatprep.subr.mxu0 0.0
    %416 = vmatpush1.msra.mxu0 0.0
    %417 = vmatprep.subr.mxu0 0.0
    %418 = vmatpush1.msra.mxu0 0.0
    %419 = vmatprep.subr.mxu0 0.0
    %420 = vmatpush1.msra.mxu0 0.0
    %421 = vmatprep.subr.mxu0 0.0
    %422 = vmatpush1.msra.mxu0 0.0
    %423 = vmatprep.subr.mxu0 0.0
    %424 = vmatpush1.msra.mxu0 0.0
    %425 = vmatprep.subr.mxu0 0.0
    %426 = vmatpush1.msra.mxu0 0.0
    %427 = vmatprep.subr.mxu0 0.0
    %428 = vmatpush1.msra.mxu0 0.0
    %429 = vmatprep.subr.mxu0 0.0
    %430 = vmatpush1.msra.mxu0 0.0
    %431 = vmatprep.subr.mxu0 0.0
    %432 = vmatpush1.msra.mxu0 0.0
    %433 = vmatprep.subr.mxu0 0.0
    %434 = vmatpush1.msra.mxu0 0.0
    %435 = vmatprep.subr.mxu0 0.0
    %436 = vmatpush1.msra.mxu0 0.0
    %437 = vmatprep.subr.mxu0 0.0
    %438 = vmatpush1.msra.mxu0 0.0
    %439 = vmatprep.mubr.f32.mxu0 0.0
    %440 = vmatmul.mubr.f32.gmra.mrb[0].mxu0 %v370
    %v441 = vpop.f32.mrb[0].mxu0
    %v442 = vadd.f32 %v30, %v441
    %v443 = vpop.f32.mrb[0].mxu0
    %v444 = vadd.f32 %v30, %v443
    %445 = vmatprep.mubr.f32.mxu0 0.0
    %446 = vmatmul.mubr.f32.gmra.mrb[0].mxu0 %v373
    %v447 = vpop.f32.mrb[0].mxu0
    %v448 = vadd.f32 %v35, %v447
    %v449 = vpop.f32.mrb[0].mxu0
    %v450 = vadd.f32 %v35, %v449
    %451 = vdwg.mxu0
    %452 = vmatprep.subr.mxu0 %v339
    %453 = vmatpush1.msra.mxu0 %v338
    %454 = vmatprep.subr.mxu0 %v343
    %455 = vmatpush1.msra.mxu0 %v342
    %456 = vmatprep.subr.mxu0 %v347
    %457 = vmatpush1.msra.mxu0 %v346
    %458 = vmatprep.subr.mxu0 %v351
    %459 = vmatpush1.msra.mxu0 %v350
    %460 = vmatprep.subr.mxu0 %v355
    %461 = vmatpush1.msra.mxu0 %v354
    %462 = vmatprep.subr.mxu0 %v359
    %463 = vmatpush1.msra.mxu0 %v358
    %464 = vmatprep.subr.mxu0 %v363
    %465 = vmatpush1.msra.mxu0 %v362
    %466 = vmatprep.subr.mxu0 %v367
    %467 = vmatpush1.msra.mxu0 %v366
    %468 = vmatprep.subr.mxu0 0.0
    %469 = vmatpush1.msra.mxu0 0.0
    %470 = vmatprep.subr.mxu0 0.0
    %471 = vmatpush1.msra.mxu0 0.0
    %472 = vmatprep.subr.mxu0 0.0
    %473 = vmatpush1.msra.mxu0 0.0
    %474 = vmatprep.subr.mxu0 0.0
    %475 = vmatpush1.msra.mxu0 0.0
    %476 = vmatprep.subr.mxu0 0.0
    %477 = vmatpush1.msra.mxu0 0.0
    %478 = vmatprep.subr.mxu0 0.0
    %479 = vmatpush1.msra.mxu0 0.0
    %480 = vmatprep.subr.mxu0 0.0
    %481 = vmatpush1.msra.mxu0 0.0
    %482 = vmatprep.subr.mxu0 0.0
    %483 = vmatpush1.msra.mxu0 0.0
    %484 = vmatprep.subr.mxu0 0.0
    %485 = vmatpush1.msra.mxu0 0.0
    %486 = vmatprep.subr.mxu0 0.0
    %487 = vmatpush1.msra.mxu0 0.0
    %488 = vmatprep.subr.mxu0 0.0
    %489 = vmatpush1.msra.mxu0 0.0
    %490 = vmatprep.subr.mxu0 0.0
    %491 = vmatpush1.msra.mxu0 0.0
    %492 = vmatprep.subr.mxu0 0.0
    %493 = vmatpush1.msra.mxu0 0.0
    %494 = vmatprep.subr.mxu0 0.0
    %495 = vmatpush1.msra.mxu0 0.0
    %496 = vmatprep.subr.mxu0 0.0
    %497 = vmatpush1.msra.mxu0 0.0
    %498 = vmatprep.subr.mxu0 0.0
    %499 = vmatpush1.msra.mxu0 0.0
    %500 = vmatprep.subr.mxu0 0.0
    %501 = vmatpush1.msra.mxu0 0.0
    %502 = vmatprep.subr.mxu0 0.0
    %503 = vmatpush1.msra.mxu0 0.0
    %504 = vmatprep.subr.mxu0 0.0
    %505 = vmatpush1.msra.mxu0 0.0
    %506 = vmatprep.subr.mxu0 0.0
    %507 = vmatpush1.msra.mxu0 0.0
    %508 = vmatprep.subr.mxu0 0.0
    %509 = vmatpush1.msra.mxu0 0.0
    %510 = vmatprep.subr.mxu0 0.0
    %511 = vmatpush1.msra.mxu0 0.0
    %512 = vmatprep.subr.mxu0 0.0
    %513 = vmatpush1.msra.mxu0 0.0
    %514 = vmatprep.subr.mxu0 0.0
    %515 = vmatpush1.msra.mxu0 0.0
    %516 = vmatprep.mubr.f32.mxu0 0.0
    %517 = vmatmul.mubr.f32.gmra.mrb[0].mxu0 %v370
    %v518 = vpop.f32.mrb[0].mxu0
    %v519 = vadd.f32 %v30, %v518
    %v520 = vpop.f32.mrb[0].mxu0
    %v521 = vadd.f32 %v30, %v520
    %522 = vmatprep.mubr.f32.mxu0 0.0
    %523 = vmatmul.mubr.f32.gmra.mrb[0].mxu0 %v373
    %v524 = vpop.f32.mrb[0].mxu0
    %v525 = vadd.f32 %v35, %v524
    %v526 = vpop.f32.mrb[0].mxu0
    %v527 = vadd.f32 %v35, %v526
    %528 = vdwg.mxu0
    %v529 = vmax.f32 %v442, 0.0
    %v530 = vmax.f32 %v444, 0.0
    %v531 = vmax.f32 %v519, 0.0
    %v532 = vmax.f32 %v521, 0.0
    %v533 = vmax.f32 %v448, 0.0
    %v534 = vmax.f32 %v450, 0.0
    %v535 = vmax.f32 %v525, 0.0
    %v536 = vmax.f32 %v527, 0.0
    %vm537 = vcmask 130048
    %v539 = vsel %vm537, %v16, 0
    %541 = vmatprep.subr.mxu0 %v530
    %542 = vmatpush1.msra.mxu0 %v529
    %543 = vmatprep.subr.mxu0 %v534
    %544 = vmatpush1.msra.mxu0 %v533
    %545 = vmatprep.subr.mxu0 0.0
    %546 = vmatpush1.msra.mxu0 0.0
    %547 = vmatprep.subr.mxu0 0.0
    %548 = vmatpush1.msra.mxu0 0.0
    %549 = vmatprep.subr.mxu0 0.0
    %550 = vmatpush1.msra.mxu0 0.0
    %551 = vmatprep.subr.mxu0 0.0
    %552 = vmatpush1.msra.mxu0 0.0
    %553 = vmatprep.subr.mxu0 0.0
    %554 = vmatpush1.msra.mxu0 0.0
    %555 = vmatprep.subr.mxu0 0.0
    %556 = vmatpush1.msra.mxu0 0.0
    %557 = vmatprep.subr.mxu0 0.0
    %558 = vmatpush1.msra.mxu0 0.0
    %559 = vmatprep.subr.mxu0 0.0
    %560 = vmatpush1.msra.mxu0 0.0
    %561 = vmatprep.subr.mxu0 0.0
    %562 = vmatpush1.msra.mxu0 0.0
    %563 = vmatprep.subr.mxu0 0.0
    %564 = vmatpush1.msra.mxu0 0.0
    %565 = vmatprep.subr.mxu0 0.0
    %566 = vmatpush1.msra.mxu0 0.0
    %567 = vmatprep.subr.mxu0 0.0
    %568 = vmatpush1.msra.mxu0 0.0
    %569 = vmatprep.subr.mxu0 0.0
    %570 = vmatpush1.msra.mxu0 0.0
    %571 = vmatprep.subr.mxu0 0.0
    %572 = vmatpush1.msra.mxu0 0.0
    %573 = vmatprep.subr.mxu0 0.0
    %574 = vmatpush1.msra.mxu0 0.0
    %575 = vmatprep.subr.mxu0 0.0
    %576 = vmatpush1.msra.mxu0 0.0
    %577 = vmatprep.subr.mxu0 0.0
    %578 = vmatpush1.msra.mxu0 0.0
    %579 = vmatprep.subr.mxu0 0.0
    %580 = vmatpush1.msra.mxu0 0.0
    %581 = vmatprep.subr.mxu0 0.0
    %582 = vmatpush1.msra.mxu0 0.0
    %583 = vmatprep.subr.mxu0 0.0
    %584 = vmatpush1.msra.mxu0 0.0
    %585 = vmatprep.subr.mxu0 0.0
    %586 = vmatpush1.msra.mxu0 0.0
    %587 = vmatprep.subr.mxu0 0.0
    %588 = vmatpush1.msra.mxu0 0.0
    %589 = vmatprep.subr.mxu0 0.0
    %590 = vmatpush1.msra.mxu0 0.0
    %591 = vmatprep.subr.mxu0 0.0
    %592 = vmatpush1.msra.mxu0 0.0
    %593 = vmatprep.subr.mxu0 0.0
    %594 = vmatpush1.msra.mxu0 0.0
    %595 = vmatprep.subr.mxu0 0.0
    %596 = vmatpush1.msra.mxu0 0.0
    %597 = vmatprep.subr.mxu0 0.0
    %598 = vmatpush1.msra.mxu0 0.0
    %599 = vmatprep.subr.mxu0 0.0
    %600 = vmatpush1.msra.mxu0 0.0
    %601 = vmatprep.subr.mxu0 0.0
    %602 = vmatpush1.msra.mxu0 0.0
    %603 = vmatprep.subr.mxu0 0.0
    %604 = vmatpush1.msra.mxu0 0.0
    %605 = vmatprep.mubr.f32.mxu0 0.0
    %606 = vmatmul.mubr.f32.gmra.mrb[0].mxu0 %v539
    %v607 = vpop.f32.mrb[0].mxu0
    %v608 = vadd.f32 %v41, %v607
    %v609 = vpop.f32.mrb[0].mxu0
    %v610 = vadd.f32 %v41, %v609
    %611 = vdwg.mxu0
    %612 = vmatprep.subr.mxu0 %v532
    %613 = vmatpush1.msra.mxu0 %v531
    %614 = vmatprep.subr.mxu0 %v536
    %615 = vmatpush1.msra.mxu0 %v535
    %616 = vmatprep.subr.mxu0 0.0
    %617 = vmatpush1.msra.mxu0 0.0
    %618 = vmatprep.subr.mxu0 0.0
    %619 = vmatpush1.msra.mxu0 0.0
    %620 = vmatprep.subr.mxu0 0.0
    %621 = vmatpush1.msra.mxu0 0.0
    %622 = vmatprep.subr.mxu0 0.0
    %623 = vmatpush1.msra.mxu0 0.0
    %624 = vmatprep.subr.mxu0 0.0
    %625 = vmatpush1.msra.mxu0 0.0
    %626 = vmatprep.subr.mxu0 0.0
    %627 = vmatpush1.msra.mxu0 0.0
    %628 = vmatprep.subr.mxu0 0.0
    %629 = vmatpush1.msra.mxu0 0.0
    %630 = vmatprep.subr.mxu0 0.0
    %631 = vmatpush1.msra.mxu0 0.0
    %632 = vmatprep.subr.mxu0 0.0
    %633 = vmatpush1.msra.mxu0 0.0
    %634 = vmatprep.subr.mxu0 0.0
    %635 = vmatpush1.msra.mxu0 0.0
    %636 = vmatprep.subr.mxu0 0.0
    %637 = vmatpush1.msra.mxu0 0.0
    %638 = vmatprep.subr.mxu0 0.0
    %639 = vmatpush1.msra.mxu0 0.0
    %640 = vmatprep.subr.mxu0 0.0
    %641 = vmatpush1.msra.mxu0 0.0
    %642 = vmatprep.subr.mxu0 0.0
    %643 = vmatpush1.msra.mxu0 0.0
    %644 = vmatprep.subr.mxu0 0.0
    %645 = vmatpush1.msra.mxu0 0.0
    %646 = vmatprep.subr.mxu0 0.0
    %647 = vmatpush1.msra.mxu0 0.0
    %648 = vmatprep.subr.mxu0 0.0
    %649 = vmatpush1.msra.mxu0 0.0
    %650 = vmatprep.subr.mxu0 0.0
    %651 = vmatpush1.msra.mxu0 0.0
    %652 = vmatprep.subr.mxu0 0.0
    %653 = vmatpush1.msra.mxu0 0.0
    %654 = vmatprep.subr.mxu0 0.0
    %655 = vmatpush1.msra.mxu0 0.0
    %656 = vmatprep.subr.mxu0 0.0
    %657 = vmatpush1.msra.mxu0 0.0
    %658 = vmatprep.subr.mxu0 0.0
    %659 = vmatpush1.msra.mxu0 0.0
    %660 = vmatprep.subr.mxu0 0.0
    %661 = vmatpush1.msra.mxu0 0.0
    %662 = vmatprep.subr.mxu0 0.0
    %663 = vmatpush1.msra.mxu0 0.0
    %664 = vmatprep.subr.mxu0 0.0
    %665 = vmatpush1.msra.mxu0 0.0
    %666 = vmatprep.subr.mxu0 0.0
    %667 = vmatpush1.msra.mxu0 0.0
    %668 = vmatprep.subr.mxu0 0.0
    %669 = vmatpush1.msra.mxu0 0.0
    %670 = vmatprep.subr.mxu0 0.0
    %671 = vmatpush1.msra.mxu0 0.0
    %672 = vmatprep.subr.mxu0 0.0
    %673 = vmatpush1.msra.mxu0 0.0
    %674 = vmatprep.subr.mxu0 0.0
    %675 = vmatpush1.msra.mxu0 0.0
    %676 = vmatprep.mubr.f32.mxu0 0.0
    %677 = vmatmul.mubr.f32.gmra.mrb[0].mxu0 %v539
    %v678 = vpop.f32.mrb[0].mxu0
    %v679 = vadd.f32 %v41, %v678
    %v680 = vpop.f32.mrb[0].mxu0
    %v681 = vadd.f32 %v41, %v680
    %682 = vdwg.mxu0
    %v683 = vmax.f32 %v608, 0.0
    %v684 = vmax.f32 %v610, 0.0
    %v685 = vmax.f32 %v679, 0.0
    %v686 = vmax.f32 %v681, 0.0
    %v687 = vadd.f32 %v683, %v684
    %v688 = vadd.f32 %v687, %v685
    %v689 = vadd.f32 %v688, %v686
    %690 = vadd.xlane.f32.xlu0 %v689
    %v691 = vpop.xlane.xlu0 %690
    %v692 = vadd.f32 %v691, 0.0
    %s693 = scalar_lea.vmem [#allocation2], 32
    %v694 = vld [vmem:[%s693] sm:$0xff]
    %v695 = vld [vmem:[%s693 + $0x8] sm:$0xff]
    %v696 = vld [vmem:[%s693 + $0x10] sm:$0xff]
    %v697 = vld [vmem:[%s693 + $0x18] sm:$0xff]
    %698 = vmatprep.subr.mxu0 %v695
    %699 = vmatpush1.msra.mxu0 %v694
    %700 = vmatprep.subr.mxu0 0.0
    %701 = vmatpush1.msra.mxu0 0.0
    %702 = vmatprep.subr.mxu0 0.0
    %703 = vmatpush1.msra.mxu0 0.0
    %704 = vmatprep.subr.mxu0 0.0
    %705 = vmatpush1.msra.mxu0 0.0
    %706 = vmatprep.subr.mxu0 0.0
    %707 = vmatpush1.msra.mxu0 0.0
    %708 = vmatprep.subr.mxu0 0.0
    %709 = vmatpush1.msra.mxu0 0.0
    %710 = vmatprep.subr.mxu0 0.0
    %711 = vmatpush1.msra.mxu0 0.0
    %712 = vmatprep.subr.mxu0 0.0
    %713 = vmatpush1.msra.mxu0 0.0
    %714 = vmatprep.subr.mxu0 0.0
    %715 = vmatpush1.msra.mxu0 0.0
    %716 = vmatprep.subr.mxu0 0.0
    %717 = vmatpush1.msra.mxu0 0.0
    %718 = vmatprep.subr.mxu0 0.0
    %719 = vmatpush1.msra.mxu0 0.0
    %720 = vmatprep.subr.mxu0 0.0
    %721 = vmatpush1.msra.mxu0 0.0
    %722 = vmatprep.subr.mxu0 0.0
    %723 = vmatpush1.msra.mxu0 0.0
    %724 = vmatprep.subr.mxu0 0.0
    %725 = vmatpush1.msra.mxu0 0.0
    %726 = vmatprep.subr.mxu0 0.0
    %727 = vmatpush1.msra.mxu0 0.0
    %728 = vmatprep.subr.mxu0 0.0
    %729 = vmatpush1.msra.mxu0 0.0
    %730 = vmatprep.subr.mxu0 0.0
    %731 = vmatpush1.msra.mxu0 0.0
    %732 = vmatprep.subr.mxu0 0.0
    %733 = vmatpush1.msra.mxu0 0.0
    %734 = vmatprep.subr.mxu0 0.0
    %735 = vmatpush1.msra.mxu0 0.0
    %736 = vmatprep.subr.mxu0 0.0
    %737 = vmatpush1.msra.mxu0 0.0
    %738 = vmatprep.subr.mxu0 0.0
    %739 = vmatpush1.msra.mxu0 0.0
    %740 = vmatprep.subr.mxu0 0.0
    %741 = vmatpush1.msra.mxu0 0.0
    %742 = vmatprep.subr.mxu0 0.0
    %743 = vmatpush1.msra.mxu0 0.0
    %744 = vmatprep.subr.mxu0 0.0
    %745 = vmatpush1.msra.mxu0 0.0
    %746 = vmatprep.subr.mxu0 0.0
    %747 = vmatpush1.msra.mxu0 0.0
    %748 = vmatprep.subr.mxu0 0.0
    %749 = vmatpush1.msra.mxu0 0.0
    %750 = vmatprep.subr.mxu0 0.0
    %751 = vmatpush1.msra.mxu0 0.0
    %752 = vmatprep.subr.mxu0 0.0
    %753 = vmatpush1.msra.mxu0 0.0
    %754 = vmatprep.subr.mxu0 0.0
    %755 = vmatpush1.msra.mxu0 0.0
    %756 = vmatprep.subr.mxu0 0.0
    %757 = vmatpush1.msra.mxu0 0.0
    %758 = vmatprep.subr.mxu0 0.0
    %759 = vmatpush1.msra.mxu0 0.0
    %760 = vmatprep.subr.mxu0 0.0
    %761 = vmatpush1.msra.mxu0 0.0
    %762 = vmatprep.mubr.f32.mxu0 0.0
    %763 = vmatmul.mubr.f32.gmra.mrb[0].mxu0 %v87
    %v764 = vpop.f32.mrb[0].mxu0
    %v765 = vadd.f32 0.0, %v764
    %v766 = vpop.f32.mrb[0].mxu0
    %v767 = vadd.f32 0.0, %v766
    %768 = vmatprep.mubr.f32.mxu0 0.0
    %769 = vmatmul.mubr.f32.gmra.mrb[0].mxu0 %v90
    %v770 = vpop.f32.mrb[0].mxu0
    %v771 = vadd.f32 0.0, %v770
    %v772 = vpop.f32.mrb[0].mxu0
    %v773 = vadd.f32 0.0, %v772
    %774 = vmatprep.mubr.f32.mxu0 0.0
    %775 = vmatmul.mubr.f32.gmra.mrb[0].mxu0 %v93
    %v776 = vpop.f32.mrb[0].mxu0
    %v777 = vadd.f32 0.0, %v776
    %v778 = vpop.f32.mrb[0].mxu0
    %v779 = vadd.f32 0.0, %v778
    %780 = vmatprep.mubr.f32.mxu0 0.0
    %781 = vmatmul.mubr.f32.gmra.mrb[0].mxu0 %v96
    %v782 = vpop.f32.mrb[0].mxu0
    %v783 = vadd.f32 0.0, %v782
    %v784 = vpop.f32.mrb[0].mxu0
    %v785 = vadd.f32 0.0, %v784
    %786 = vmatprep.mubr.f32.mxu0 0.0
    %787 = vmatmul.mubr.f32.gmra.mrb[0].mxu0 %v99
    %v788 = vpop.f32.mrb[0].mxu0
    %v789 = vadd.f32 0.0, %v788
    %v790 = vpop.f32.mrb[0].mxu0
    %v791 = vadd.f32 0.0, %v790
    %792 = vmatprep.mubr.f32.mxu0 0.0
    %793 = vmatmul.mubr.f32.gmra.mrb[0].mxu0 %v102
    %v794 = vpop.f32.mrb[0].mxu0
    %v795 = vadd.f32 0.0, %v794
    %v796 = vpop.f32.mrb[0].mxu0
    %v797 = vadd.f32 0.0, %v796
    %798 = vmatprep.mubr.f32.mxu0 0.0
    %799 = vmatmul.mubr.f32.gmra.mrb[0].mxu0 %v105
    %v800 = vpop.f32.mrb[0].mxu0
    %v801 = vadd.f32 0.0, %v800
    %v802 = vpop.f32.mrb[0].mxu0
    %v803 = vadd.f32 0.0, %v802
    %804 = vmatprep.mubr.f32.mxu0 0.0
    %805 = vmatmul.mubr.f32.gmra.mrb[0].mxu0 %v108
    %v806 = vpop.f32.mrb[0].mxu0
    %v807 = vadd.f32 0.0, %v806
    %v808 = vpop.f32.mrb[0].mxu0
    %v809 = vadd.f32 0.0, %v808
    %810 = vdwg.mxu0
    %811 = vmatprep.subr.mxu0 %v697
    %812 = vmatpush1.msra.mxu0 %v696
    %813 = vmatprep.subr.mxu0 0.0
    %814 = vmatpush1.msra.mxu0 0.0
    %815 = vmatprep.subr.mxu0 0.0
    %816 = vmatpush1.msra.mxu0 0.0
    %817 = vmatprep.subr.mxu0 0.0
    %818 = vmatpush1.msra.mxu0 0.0
    %819 = vmatprep.subr.mxu0 0.0
    %820 = vmatpush1.msra.mxu0 0.0
    %821 = vmatprep.subr.mxu0 0.0
    %822 = vmatpush1.msra.mxu0 0.0
    %823 = vmatprep.subr.mxu0 0.0
    %824 = vmatpush1.msra.mxu0 0.0
    %825 = vmatprep.subr.mxu0 0.0
    %826 = vmatpush1.msra.mxu0 0.0
    %827 = vmatprep.subr.mxu0 0.0
    %828 = vmatpush1.msra.mxu0 0.0
    %829 = vmatprep.subr.mxu0 0.0
    %830 = vmatpush1.msra.mxu0 0.0
    %831 = vmatprep.subr.mxu0 0.0
    %832 = vmatpush1.msra.mxu0 0.0
    %833 = vmatprep.subr.mxu0 0.0
    %834 = vmatpush1.msra.mxu0 0.0
    %835 = vmatprep.subr.mxu0 0.0
    %836 = vmatpush1.msra.mxu0 0.0
    %837 = vmatprep.subr.mxu0 0.0
    %838 = vmatpush1.msra.mxu0 0.0
    %839 = vmatprep.subr.mxu0 0.0
    %840 = vmatpush1.msra.mxu0 0.0
    %841 = vmatprep.subr.mxu0 0.0
    %842 = vmatpush1.msra.mxu0 0.0
    %843 = vmatprep.subr.mxu0 0.0
    %844 = vmatpush1.msra.mxu0 0.0
    %845 = vmatprep.subr.mxu0 0.0
    %846 = vmatpush1.msra.mxu0 0.0
    %847 = vmatprep.subr.mxu0 0.0
    %848 = vmatpush1.msra.mxu0 0.0
    %849 = vmatprep.subr.mxu0 0.0
    %850 = vmatpush1.msra.mxu0 0.0
    %851 = vmatprep.subr.mxu0 0.0
    %852 = vmatpush1.msra.mxu0 0.0
    %853 = vmatprep.subr.mxu0 0.0
    %854 = vmatpush1.msra.mxu0 0.0
    %855 = vmatprep.subr.mxu0 0.0
    %856 = vmatpush1.msra.mxu0 0.0
    %857 = vmatprep.subr.mxu0 0.0
    %858 = vmatpush1.msra.mxu0 0.0
    %859 = vmatprep.subr.mxu0 0.0
    %860 = vmatpush1.msra.mxu0 0.0
    %861 = vmatprep.subr.mxu0 0.0
    %862 = vmatpush1.msra.mxu0 0.0
    %863 = vmatprep.subr.mxu0 0.0
    %864 = vmatpush1.msra.mxu0 0.0
    %865 = vmatprep.subr.mxu0 0.0
    %866 = vmatpush1.msra.mxu0 0.0
    %867 = vmatprep.subr.mxu0 0.0
    %868 = vmatpush1.msra.mxu0 0.0
    %869 = vmatprep.subr.mxu0 0.0
    %870 = vmatpush1.msra.mxu0 0.0
    %871 = vmatprep.subr.mxu0 0.0
    %872 = vmatpush1.msra.mxu0 0.0
    %873 = vmatprep.subr.mxu0 0.0
    %874 = vmatpush1.msra.mxu0 0.0
    %875 = vmatprep.mubr.f32.mxu0 0.0
    %876 = vmatmul.mubr.f32.gmra.mrb[0].mxu0 %v87
    %v877 = vpop.f32.mrb[0].mxu0
    %v878 = vadd.f32 0.0, %v877
    %v879 = vpop.f32.mrb[0].mxu0
    %v880 = vadd.f32 0.0, %v879
    %881 = vmatprep.mubr.f32.mxu0 0.0
    %882 = vmatmul.mubr.f32.gmra.mrb[0].mxu0 %v90
    %v883 = vpop.f32.mrb[0].mxu0
    %v884 = vadd.f32 0.0, %v883
    %v885 = vpop.f32.mrb[0].mxu0
    %v886 = vadd.f32 0.0, %v885
    %887 = vmatprep.mubr.f32.mxu0 0.0
    %888 = vmatmul.mubr.f32.gmra.mrb[0].mxu0 %v93
    %v889 = vpop.f32.mrb[0].mxu0
    %v890 = vadd.f32 0.0, %v889
    %v891 = vpop.f32.mrb[0].mxu0
    %v892 = vadd.f32 0.0, %v891
    %893 = vmatprep.mubr.f32.mxu0 0.0
    %894 = vmatmul.mubr.f32.gmra.mrb[0].mxu0 %v96
    %v895 = vpop.f32.mrb[0].mxu0
    %v896 = vadd.f32 0.0, %v895
    %v897 = vpop.f32.mrb[0].mxu0
    %v898 = vadd.f32 0.0, %v897
    %899 = vmatprep.mubr.f32.mxu0 0.0
    %900 = vmatmul.mubr.f32.gmra.mrb[0].mxu0 %v99
    %v901 = vpop.f32.mrb[0].mxu0
    %v902 = vadd.f32 0.0, %v901
    %v903 = vpop.f32.mrb[0].mxu0
    %v904 = vadd.f32 0.0, %v903
    %905 = vmatprep.mubr.f32.mxu0 0.0
    %906 = vmatmul.mubr.f32.gmra.mrb[0].mxu0 %v102
    %v907 = vpop.f32.mrb[0].mxu0
    %v908 = vadd.f32 0.0, %v907
    %v909 = vpop.f32.mrb[0].mxu0
    %v910 = vadd.f32 0.0, %v909
    %911 = vmatprep.mubr.f32.mxu0 0.0
    %912 = vmatmul.mubr.f32.gmra.mrb[0].mxu0 %v105
    %v913 = vpop.f32.mrb[0].mxu0
    %v914 = vadd.f32 0.0, %v913
    %v915 = vpop.f32.mrb[0].mxu0
    %v916 = vadd.f32 0.0, %v915
    %917 = vmatprep.mubr.f32.mxu0 0.0
    %918 = vmatmul.mubr.f32.gmra.mrb[0].mxu0 %v108
    %v919 = vpop.f32.mrb[0].mxu0
    %v920 = vadd.f32 0.0, %v919
    %v921 = vpop.f32.mrb[0].mxu0
    %v922 = vadd.f32 0.0, %v921
    %923 = vdwg.mxu0
    %v924 = vmax.f32 %v765, 0.0
    %v925 = vmax.f32 %v767, 0.0
    %v926 = vmax.f32 %v878, 0.0
    %v927 = vmax.f32 %v880, 0.0
    %v928 = vmax.f32 %v771, 0.0
    %v929 = vmax.f32 %v773, 0.0
    %v930 = vmax.f32 %v884, 0.0
    %v931 = vmax.f32 %v886, 0.0
    %v932 = vmax.f32 %v777, 0.0
    %v933 = vmax.f32 %v779, 0.0
    %v934 = vmax.f32 %v890, 0.0
    %v935 = vmax.f32 %v892, 0.0
    %v936 = vmax.f32 %v783, 0.0
    %v937 = vmax.f32 %v785, 0.0
    %v938 = vmax.f32 %v896, 0.0
    %v939 = vmax.f32 %v898, 0.0
    %v940 = vmax.f32 %v789, 0.0
    %v941 = vmax.f32 %v791, 0.0
    %v942 = vmax.f32 %v902, 0.0
    %v943 = vmax.f32 %v904, 0.0
    %v944 = vmax.f32 %v795, 0.0
    %v945 = vmax.f32 %v797, 0.0
    %v946 = vmax.f32 %v908, 0.0
    %v947 = vmax.f32 %v910, 0.0
    %v948 = vmax.f32 %v801, 0.0
    %v949 = vmax.f32 %v803, 0.0
    %v950 = vmax.f32 %v914, 0.0
    %v951 = vmax.f32 %v916, 0.0
    %v952 = vmax.f32 %v807, 0.0
    %v953 = vmax.f32 %v809, 0.0
    %v954 = vmax.f32 %v920, 0.0
    %v955 = vmax.f32 %v922, 0.0
    %956 = vmatprep.subr.mxu0 %v925
    %957 = vmatpush1.msra.mxu0 %v924
    %958 = vmatprep.subr.mxu0 %v929
    %959 = vmatpush1.msra.mxu0 %v928
    %960 = vmatprep.subr.mxu0 %v933
    %961 = vmatpush1.msra.mxu0 %v932
    %962 = vmatprep.subr.mxu0 %v937
    %963 = vmatpush1.msra.mxu0 %v936
    %964 = vmatprep.subr.mxu0 %v941
    %965 = vmatpush1.msra.mxu0 %v940
    %966 = vmatprep.subr.mxu0 %v945
    %967 = vmatpush1.msra.mxu0 %v944
    %968 = vmatprep.subr.mxu0 %v949
    %969 = vmatpush1.msra.mxu0 %v948
    %970 = vmatprep.subr.mxu0 %v953
    %971 = vmatpush1.msra.mxu0 %v952
    %972 = vmatprep.subr.mxu0 0.0
    %973 = vmatpush1.msra.mxu0 0.0
    %974 = vmatprep.subr.mxu0 0.0
    %975 = vmatpush1.msra.mxu0 0.0
    %976 = vmatprep.subr.mxu0 0.0
    %977 = vmatpush1.msra.mxu0 0.0
    %978 = vmatprep.subr.mxu0 0.0
    %979 = vmatpush1.msra.mxu0 0.0
    %980 = vmatprep.subr.mxu0 0.0
    %981 = vmatpush1.msra.mxu0 0.0
    %982 = vmatprep.subr.mxu0 0.0
    %983 = vmatpush1.msra.mxu0 0.0
    %984 = vmatprep.subr.mxu0 0.0
    %985 = vmatpush1.msra.mxu0 0.0
    %986 = vmatprep.subr.mxu0 0.0
    %987 = vmatpush1.msra.mxu0 0.0
    %988 = vmatprep.subr.mxu0 0.0
    %989 = vmatpush1.msra.mxu0 0.0
    %990 = vmatprep.subr.mxu0 0.0
    %991 = vmatpush1.msra.mxu0 0.0
    %992 = vmatprep.subr.mxu0 0.0
    %993 = vmatpush1.msra.mxu0 0.0
    %994 = vmatprep.subr.mxu0 0.0
    %995 = vmatpush1.msra.mxu0 0.0
    %996 = vmatprep.subr.mxu0 0.0
    %997 = vmatpush1.msra.mxu0 0.0
    %998 = vmatprep.subr.mxu0 0.0
    %999 = vmatpush1.msra.mxu0 0.0
    %1000 = vmatprep.subr.mxu0 0.0
    %1001 = vmatpush1.msra.mxu0 0.0
    %1002 = vmatprep.subr.mxu0 0.0
    %1003 = vmatpush1.msra.mxu0 0.0
    %1004 = vmatprep.subr.mxu0 0.0
    %1005 = vmatpush1.msra.mxu0 0.0
    %1006 = vmatprep.subr.mxu0 0.0
    %1007 = vmatpush1.msra.mxu0 0.0
    %1008 = vmatprep.subr.mxu0 0.0
    %1009 = vmatpush1.msra.mxu0 0.0
    %1010 = vmatprep.subr.mxu0 0.0
    %1011 = vmatpush1.msra.mxu0 0.0
    %1012 = vmatprep.subr.mxu0 0.0
    %1013 = vmatpush1.msra.mxu0 0.0
    %1014 = vmatprep.subr.mxu0 0.0
    %1015 = vmatpush1.msra.mxu0 0.0
    %1016 = vmatprep.subr.mxu0 0.0
    %1017 = vmatpush1.msra.mxu0 0.0
    %1018 = vmatprep.subr.mxu0 0.0
    %1019 = vmatpush1.msra.mxu0 0.0
    %1020 = vmatprep.mubr.f32.mxu0 0.0
    %1021 = vmatmul.mubr.f32.gmra.mrb[0].mxu0 %v370
    %v1022 = vpop.f32.mrb[0].mxu0
    %v1023 = vadd.f32 %v30, %v1022
    %v1024 = vpop.f32.mrb[0].mxu0
    %v1025 = vadd.f32 %v30, %v1024
    %1026 = vmatprep.mubr.f32.mxu0 0.0
    %1027 = vmatmul.mubr.f32.gmra.mrb[0].mxu0 %v373
    %v1028 = vpop.f32.mrb[0].mxu0
    %v1029 = vadd.f32 %v35, %v1028
    %v1030 = vpop.f32.mrb[0].mxu0
    %v1031 = vadd.f32 %v35, %v1030
    %1032 = vdwg.mxu0
    %1033 = vmatprep.subr.mxu0 %v927
    %1034 = vmatpush1.msra.mxu0 %v926
    %1035 = vmatprep.subr.mxu0 %v931
    %1036 = vmatpush1.msra.mxu0 %v930
    %1037 = vmatprep.subr.mxu0 %v935
    %1038 = vmatpush1.msra.mxu0 %v934
    %1039 = vmatprep.subr.mxu0 %v939
    %1040 = vmatpush1.msra.mxu0 %v938
    %1041 = vmatprep.subr.mxu0 %v943
    %1042 = vmatpush1.msra.mxu0 %v942
    %1043 = vmatprep.subr.mxu0 %v947
    %1044 = vmatpush1.msra.mxu0 %v946
    %1045 = vmatprep.subr.mxu0 %v951
    %1046 = vmatpush1.msra.mxu0 %v950
    %1047 = vmatprep.subr.mxu0 %v955
    %1048 = vmatpush1.msra.mxu0 %v954
    %1049 = vmatprep.subr.mxu0 0.0
    %1050 = vmatpush1.msra.mxu0 0.0
    %1051 = vmatprep.subr.mxu0 0.0
    %1052 = vmatpush1.msra.mxu0 0.0
    %1053 = vmatprep.subr.mxu0 0.0
    %1054 = vmatpush1.msra.mxu0 0.0
    %1055 = vmatprep.subr.mxu0 0.0
    %1056 = vmatpush1.msra.mxu0 0.0
    %1057 = vmatprep.subr.mxu0 0.0
    %1058 = vmatpush1.msra.mxu0 0.0
    %1059 = vmatprep.subr.mxu0 0.0
    %1060 = vmatpush1.msra.mxu0 0.0
    %1061 = vmatprep.subr.mxu0 0.0
    %1062 = vmatpush1.msra.mxu0 0.0
    %1063 = vmatprep.subr.mxu0 0.0
    %1064 = vmatpush1.msra.mxu0 0.0
    %1065 = vmatprep.subr.mxu0 0.0
    %1066 = vmatpush1.msra.mxu0 0.0
    %1067 = vmatprep.subr.mxu0 0.0
    %1068 = vmatpush1.msra.mxu0 0.0
    %1069 = vmatprep.subr.mxu0 0.0
    %1070 = vmatpush1.msra.mxu0 0.0
    %1071 = vmatprep.subr.mxu0 0.0
    %1072 = vmatpush1.msra.mxu0 0.0
    %1073 = vmatprep.subr.mxu0 0.0
    %1074 = vmatpush1.msra.mxu0 0.0
    %1075 = vmatprep.subr.mxu0 0.0
    %1076 = vmatpush1.msra.mxu0 0.0
    %1077 = vmatprep.subr.mxu0 0.0
    %1078 = vmatpush1.msra.mxu0 0.0
    %1079 = vmatprep.subr.mxu0 0.0
    %1080 = vmatpush1.msra.mxu0 0.0
    %1081 = vmatprep.subr.mxu0 0.0
    %1082 = vmatpush1.msra.mxu0 0.0
    %1083 = vmatprep.subr.mxu0 0.0
    %1084 = vmatpush1.msra.mxu0 0.0
    %1085 = vmatprep.subr.mxu0 0.0
    %1086 = vmatpush1.msra.mxu0 0.0
    %1087 = vmatprep.subr.mxu0 0.0
    %1088 = vmatpush1.msra.mxu0 0.0
    %1089 = vmatprep.subr.mxu0 0.0
    %1090 = vmatpush1.msra.mxu0 0.0
    %1091 = vmatprep.subr.mxu0 0.0
    %1092 = vmatpush1.msra.mxu0 0.0
    %1093 = vmatprep.subr.mxu0 0.0
    %1094 = vmatpush1.msra.mxu0 0.0
    %1095 = vmatprep.subr.mxu0 0.0
    %1096 = vmatpush1.msra.mxu0 0.0
    %1097 = vmatprep.mubr.f32.mxu0 0.0
    %1098 = vmatmul.mubr.f32.gmra.mrb[0].mxu0 %v370
    %v1099 = vpop.f32.mrb[0].mxu0
    %v1100 = vadd.f32 %v30, %v1099
    %v1101 = vpop.f32.mrb[0].mxu0
    %v1102 = vadd.f32 %v30, %v1101
    %1103 = vmatprep.mubr.f32.mxu0 0.0
    %1104 = vmatmul.mubr.f32.gmra.mrb[0].mxu0 %v373
    %v1105 = vpop.f32.mrb[0].mxu0
    %v1106 = vadd.f32 %v35, %v1105
    %v1107 = vpop.f32.mrb[0].mxu0
    %v1108 = vadd.f32 %v35, %v1107
    %1109 = vdwg.mxu0
    %v1110 = vmax.f32 %v1023, 0.0
    %v1111 = vmax.f32 %v1025, 0.0
    %v1112 = vmax.f32 %v1100, 0.0
    %v1113 = vmax.f32 %v1102, 0.0
    %v1114 = vmax.f32 %v1029, 0.0
    %v1115 = vmax.f32 %v1031, 0.0
    %v1116 = vmax.f32 %v1106, 0.0
    %v1117 = vmax.f32 %v1108, 0.0
    %1118 = vmatprep.subr.mxu0 %v1111
    %1119 = vmatpush1.msra.mxu0 %v1110
    %1120 = vmatprep.subr.mxu0 %v1115
    %1121 = vmatpush1.msra.mxu0 %v1114
    %1122 = vmatprep.subr.mxu0 0.0
    %1123 = vmatpush1.msra.mxu0 0.0
    %1124 = vmatprep.subr.mxu0 0.0
    %1125 = vmatpush1.msra.mxu0 0.0
    %1126 = vmatprep.subr.mxu0 0.0
    %1127 = vmatpush1.msra.mxu0 0.0
    %1128 = vmatprep.subr.mxu0 0.0
    %1129 = vmatpush1.msra.mxu0 0.0
    %1130 = vmatprep.subr.mxu0 0.0
    %1131 = vmatpush1.msra.mxu0 0.0
    %1132 = vmatprep.subr.mxu0 0.0
    %1133 = vmatpush1.msra.mxu0 0.0
    %1134 = vmatprep.subr.mxu0 0.0
    %1135 = vmatpush1.msra.mxu0 0.0
    %1136 = vmatprep.subr.mxu0 0.0
    %1137 = vmatpush1.msra.mxu0 0.0
    %1138 = vmatprep.subr.mxu0 0.0
    %1139 = vmatpush1.msra.mxu0 0.0
    %1140 = vmatprep.subr.mxu0 0.0
    %1141 = vmatpush1.msra.mxu0 0.0
    %1142 = vmatprep.subr.mxu0 0.0
    %1143 = vmatpush1.msra.mxu0 0.0
    %1144 = vmatprep.subr.mxu0 0.0
    %1145 = vmatpush1.msra.mxu0 0.0
    %1146 = vmatprep.subr.mxu0 0.0
    %1147 = vmatpush1.msra.mxu0 0.0
    %1148 = vmatprep.subr.mxu0 0.0
    %1149 = vmatpush1.msra.mxu0 0.0
    %1150 = vmatprep.subr.mxu0 0.0
    %1151 = vmatpush1.msra.mxu0 0.0
    %1152 = vmatprep.subr.mxu0 0.0
    %1153 = vmatpush1.msra.mxu0 0.0
    %1154 = vmatprep.subr.mxu0 0.0
    %1155 = vmatpush1.msra.mxu0 0.0
    %1156 = vmatprep.subr.mxu0 0.0
    %1157 = vmatpush1.msra.mxu0 0.0
    %1158 = vmatprep.subr.mxu0 0.0
    %1159 = vmatpush1.msra.mxu0 0.0
    %1160 = vmatprep.subr.mxu0 0.0
    %1161 = vmatpush1.msra.mxu0 0.0
    %1162 = vmatprep.subr.mxu0 0.0
    %1163 = vmatpush1.msra.mxu0 0.0
    %1164 = vmatprep.subr.mxu0 0.0
    %1165 = vmatpush1.msra.mxu0 0.0
    %1166 = vmatprep.subr.mxu0 0.0
    %1167 = vmatpush1.msra.mxu0 0.0
    %1168 = vmatprep.subr.mxu0 0.0
    %1169 = vmatpush1.msra.mxu0 0.0
    %1170 = vmatprep.subr.mxu0 0.0
    %1171 = vmatpush1.msra.mxu0 0.0
    %1172 = vmatprep.subr.mxu0 0.0
    %1173 = vmatpush1.msra.mxu0 0.0
    %1174 = vmatprep.subr.mxu0 0.0
    %1175 = vmatpush1.msra.mxu0 0.0
    %1176 = vmatprep.subr.mxu0 0.0
    %1177 = vmatpush1.msra.mxu0 0.0
    %1178 = vmatprep.subr.mxu0 0.0
    %1179 = vmatpush1.msra.mxu0 0.0
    %1180 = vmatprep.subr.mxu0 0.0
    %1181 = vmatpush1.msra.mxu0 0.0
    %1182 = vmatprep.mubr.f32.mxu0 0.0
    %1183 = vmatmul.mubr.f32.gmra.mrb[0].mxu0 %v539
    %v1184 = vpop.f32.mrb[0].mxu0
    %v1185 = vadd.f32 %v41, %v1184
    %v1186 = vpop.f32.mrb[0].mxu0
    %v1187 = vadd.f32 %v41, %v1186
    %1188 = vdwg.mxu0
    %1189 = vmatprep.subr.mxu0 %v1113
    %1190 = vmatpush1.msra.mxu0 %v1112
    %1191 = vmatprep.subr.mxu0 %v1117
    %1192 = vmatpush1.msra.mxu0 %v1116
    %1193 = vmatprep.subr.mxu0 0.0
    %1194 = vmatpush1.msra.mxu0 0.0
    %1195 = vmatprep.subr.mxu0 0.0
    %1196 = vmatpush1.msra.mxu0 0.0
    %1197 = vmatprep.subr.mxu0 0.0
    %1198 = vmatpush1.msra.mxu0 0.0
    %1199 = vmatprep.subr.mxu0 0.0
    %1200 = vmatpush1.msra.mxu0 0.0
    %1201 = vmatprep.subr.mxu0 0.0
    %1202 = vmatpush1.msra.mxu0 0.0
    %1203 = vmatprep.subr.mxu0 0.0
    %1204 = vmatpush1.msra.mxu0 0.0
    %1205 = vmatprep.subr.mxu0 0.0
    %1206 = vmatpush1.msra.mxu0 0.0
    %1207 = vmatprep.subr.mxu0 0.0
    %1208 = vmatpush1.msra.mxu0 0.0
    %1209 = vmatprep.subr.mxu0 0.0
    %1210 = vmatpush1.msra.mxu0 0.0
    %1211 = vmatprep.subr.mxu0 0.0
    %1212 = vmatpush1.msra.mxu0 0.0
    %1213 = vmatprep.subr.mxu0 0.0
    %1214 = vmatpush1.msra.mxu0 0.0
    %1215 = vmatprep.subr.mxu0 0.0
    %1216 = vmatpush1.msra.mxu0 0.0
    %1217 = vmatprep.subr.mxu0 0.0
    %1218 = vmatpush1.msra.mxu0 0.0
    %1219 = vmatprep.subr.mxu0 0.0
    %1220 = vmatpush1.msra.mxu0 0.0
    %1221 = vmatprep.subr.mxu0 0.0
    %1222 = vmatpush1.msra.mxu0 0.0
    %1223 = vmatprep.subr.mxu0 0.0
    %1224 = vmatpush1.msra.mxu0 0.0
    %1225 = vmatprep.subr.mxu0 0.0
    %1226 = vmatpush1.msra.mxu0 0.0
    %1227 = vmatprep.subr.mxu0 0.0
    %1228 = vmatpush1.msra.mxu0 0.0
    %1229 = vmatprep.subr.mxu0 0.0
    %1230 = vmatpush1.msra.mxu0 0.0
    %1231 = vmatprep.subr.mxu0 0.0
    %1232 = vmatpush1.msra.mxu0 0.0
    %1233 = vmatprep.subr.mxu0 0.0
    %1234 = vmatpush1.msra.mxu0 0.0
    %1235 = vmatprep.subr.mxu0 0.0
    %1236 = vmatpush1.msra.mxu0 0.0
    %1237 = vmatprep.subr.mxu0 0.0
    %1238 = vmatpush1.msra.mxu0 0.0
    %1239 = vmatprep.subr.mxu0 0.0
    %1240 = vmatpush1.msra.mxu0 0.0
    %1241 = vmatprep.subr.mxu0 0.0
    %1242 = vmatpush1.msra.mxu0 0.0
    %1243 = vmatprep.subr.mxu0 0.0
    %1244 = vmatpush1.msra.mxu0 0.0
    %1245 = vmatprep.subr.mxu0 0.0
    %1246 = vmatpush1.msra.mxu0 0.0
    %1247 = vmatprep.subr.mxu0 0.0
    %1248 = vmatpush1.msra.mxu0 0.0
    %1249 = vmatprep.subr.mxu0 0.0
    %1250 = vmatpush1.msra.mxu0 0.0
    %1251 = vmatprep.subr.mxu0 0.0
    %1252 = vmatpush1.msra.mxu0 0.0
    %1253 = vmatprep.mubr.f32.mxu0 0.0
    %1254 = vmatmul.mubr.f32.gmra.mrb[0].mxu0 %v539
    %v1255 = vpop.f32.mrb[0].mxu0
    %v1256 = vadd.f32 %v41, %v1255
    %v1257 = vpop.f32.mrb[0].mxu0
    %v1258 = vadd.f32 %v41, %v1257
    %1259 = vdwg.mxu0
    %v1260 = vmax.f32 %v1185, 0.0
    %v1261 = vmax.f32 %v1187, 0.0
    %v1262 = vmax.f32 %v1256, 0.0
    %v1263 = vmax.f32 %v1258, 0.0
    %v1264 = vadd.f32 %v1260, %v1261
    %v1265 = vadd.f32 %v1264, %v1262
    %v1266 = vadd.f32 %v1265, %v1263
    %1267 = vadd.xlane.f32.xlu0 %v1266
    %v1268 = vpop.xlane.xlu0 %1267
    %v1269 = vadd.f32 %v692, %v1268
    %v1270 = vmul.f32 %v37, %v1269
    %vm1271 = vcmask 15368
    %v1272 = vsel %vm1271, %v1270, 0.0
    %v1273 = vrot.slane %v1272, 4
    %v1274 = vadd.f32 %v1272, %v1273
    %v1275 = vrot.slane %v1274, 2
    %v1276 = vadd.f32 %v1274, %v1275
    %v1277 = vrot.slane %v1276, 1
    %v1278 = vadd.f32 %v1276, %v1277
    %v1279 = vmul.f32 %v1278, 0.0009765625
    %1281 = vrot.lane.b32.xlu0 %v43, 1
    %v1282 = vpop.permute.xlu0 %1281
    %v1284 = vadd.f32 %v1279, %v1282
    %1286 = vset.pattern.permute.xlu0 1
    %1287 = vperm.xlu0 %1286, %v1284
    %v1288 = vpop.permute.xlu0 %1287
    %s1290 = scalar_lea.vmem %s3, %s56
    %1291 = vst [vmem:[%s1290] sm:$0x1] %v1288
  $region18: #{discriminator_independent_fast.1} parent=0 // loop_footer
    %s60 = sadd.s32 1, %s56
  $region19: #{discriminator_independent_fast.1} parent=0 // loop_footer_branch
    %55 = sbr.rel target = $region15
  $region20: #{discriminator_independent_fast.1} parent=0 // loop_exit
    _
  // Predicated region
  $region21: #{discriminator_independent_fast.1} parent=0 // pred_check
    _
  $region22: #{discriminator_independent_fast.1} parent=0 // pred_check_branch
    %1293 = sbr.rel (0) target = $region24
  $region23: #{discriminator_independent_fast.1} parent=0 // pred_region
    _
  $region24: #{discriminator_independent_fast.1} parent=0 // pred_fallthru
    _
  // Predicated region
  $region25: #{discriminator_independent_fast.1} parent=0 // pred_check
    _
  $region26: #{discriminator_independent_fast.1} parent=0 // pred_check_branch
    %1295 = sbr.rel (0) target = $region28
  $region27: #{discriminator_independent_fast.1} parent=0 // pred_region
    _
  $region28: #{discriminator_independent_fast.1} parent=0 // pred_fallthru
    _

</llo_original>
